<compile_context>
chip_gen: v7x
topology: tpu7x:2x2x1
jax: 0.10.0
libtpu: 0.0.40
codegen_flags: <defaults>
</compile_context>

<pallas_src>
import numpy as np
import jax
import jax.numpy as jnp
from jax.experimental import pallas as pl
from jax.experimental.pallas import tpu as pltpu


# ---------------------------------------------------------------------------
# Model configuration (mirrors CNP_w_seperateSTD.__init__ arguments)
# ---------------------------------------------------------------------------
D_X = 4                      # in_shape[0]
D_Y = 3                      # in_shape[1]
ENC_HIDDEN = [32, 32]        # encoder_hidden_sizes
DEC_HIDDEN = [32, 32]        # decoder_hidden_sizes
ENC_OUT = 64                 # encoder_output_size

B = 2                        # n_batch
N_CTX = 8                    # n_context
N_TGT = 8                    # n_target

LANE = 128                   # lane-dense hidden width (all hidden activations 128 lanes)
PAD_IN = 8                   # ragged fan-ins (d_x+d_y=7, d_x=4) zero-padded to 8 sublanes

# Weight-slab row layout (all offsets multiples of 8, so static slices never
# cross an (8,128) tile boundary).
ROW_EW0 = 0                          # encoder layer0 weight      (8,   128)
ROW_EW1 = ROW_EW0 + PAD_IN           # 8   encoder layer1 weight  (128, 128)
ROW_WER = ROW_EW1 + LANE             # 136 fused ew2@dw0r         (128, 128)
ROW_DW0T = ROW_WER + LANE            # 264 decoder l0 target-half (8,   128)
ROW_DW1 = ROW_DW0T + PAD_IN          # 272 decoder layer1 weight  (128, 128)
ROW_DW2 = ROW_DW1 + LANE             # 400 decoder layer2 weight  (128, 128)
ROW_BIAS = ROW_DW2 + LANE            # 528 bias block             (8,   128)
N_ROWS = ROW_BIAS + 8                # 536 total rows


# ---------------------------------------------------------------------------
# Pallas kernel: whole CNP forward in one step (no grid loop over batch)
# ---------------------------------------------------------------------------
def cnp_kernel(obs_ref, tgt_ref, agg_ref, w_ref, out_ref):
    obs = obs_ref[...]            # (B*n_ctx, 8)  last column zero-padded
    tgt = tgt_ref[...]            # (B*n_tgt, 8)  last 4 columns zero-padded
    agg = agg_ref[...]            # (B*n_tgt, B*n_ctx) masked-mean + tile matrix

    # Static, sublane-aligned slices of the single packed weight slab.
    ew0 = w_ref[ROW_EW0:ROW_EW0 + PAD_IN, :]     # (8, 128)
    ew1 = w_ref[ROW_EW1:ROW_EW1 + LANE, :]       # (128, 128)
    wer = w_ref[ROW_WER:ROW_WER + LANE, :]       # (128, 128) fused ew2@dw0r
    dw0t = w_ref[ROW_DW0T:ROW_DW0T + PAD_IN, :]  # (8, 128)
    dw1 = w_ref[ROW_DW1:ROW_DW1 + LANE, :]       # (128, 128)
    dw2 = w_ref[ROW_DW2:ROW_DW2 + LANE, :]       # (128, 128)

    eb0 = w_ref[ROW_BIAS + 0:ROW_BIAS + 1, :]
    eb1 = w_ref[ROW_BIAS + 1:ROW_BIAS + 2, :]
    b0f = w_ref[ROW_BIAS + 2:ROW_BIAS + 3, :]    # eb2 @ dw0r + db0
    db1 = w_ref[ROW_BIAS + 3:ROW_BIAS + 4, :]
    db2 = w_ref[ROW_BIAS + 4:ROW_BIAS + 5, :]

    # ---- encoder MLP on all B*n_ctx context rows at once (128-lane dense) ----
    h = jnp.tanh(jnp.dot(obs, ew0, preferred_element_type=jnp.float32) + eb0)
    h = jnp.tanh(jnp.dot(h, ew1, preferred_element_type=jnp.float32) + eb1)

    # ---- masked-mean aggregation + tile-over-targets as ONE matmul ----
    # (agg already folds mask/normalizer; encoder layer 2 is fused into `wer`,
    #  its bias commutes through agg because each agg row sums to 1.)
    r = jnp.dot(agg, h, preferred_element_type=jnp.float32)        # (B*n_tgt, 128)

    # ---- decoder; concat([r, target]) expressed as a split matmul ----
    q = jnp.tanh(jnp.dot(r, wer, preferred_element_type=jnp.float32)
                 + jnp.dot(tgt, dw0t, preferred_element_type=jnp.float32)
                 + b0f)
    q = jnp.tanh(jnp.dot(q, dw1, preferred_element_type=jnp.float32) + db1)
    q = jnp.dot(q, dw2, preferred_element_type=jnp.float32) + db2  # (B*n_tgt, 128)

    out_ref[...] = q              # lane-dense (128) full store, no mask


# ---------------------------------------------------------------------------
# One-time weight packing (would be done at model init in production)
# ---------------------------------------------------------------------------
def pack_params(params):
    """Pack all six Linear layers into one lane-dense (N_ROWS, 128) f32 slab."""
    np_params = [(np.asarray(w, np.float64), np.asarray(b, np.float64))
                 for (w, b) in params]
    (ew0, eb0), (ew1, eb1), (ew2, eb2), (dw0, db0), (dw1, db1), (dw2, db2) = np_params
    enc_out = ew2.shape[1]
    d_y = dw2.shape[1]

    dw0r = dw0[:enc_out]                       # (64, 32) r-half of decoder l0
    dw0t = dw0[enc_out:]                       # (4, 32)  target-half of decoder l0

    # Fuse encoder layer2 with the r-half of decoder layer0 (done in float64
    # at pack time so the fusion introduces no extra f32 rounding).
    w_er = ew2 @ dw0r                          # (32, 32)
    b0f = eb2 @ dw0r + db0                     # (32,)  valid: agg rows sum to 1

    slab = np.zeros((N_ROWS, LANE), np.float32)

    def put(row, w):
        r, c = w.shape
        slab[row:row + r, :c] = w.astype(np.float32)

    put(ROW_EW0, ew0)       # fan-in 7 -> rows 0..6 of an 8-row block
    put(ROW_EW1, ew1)       # fan-in 32 -> rows 0..31 of a 128-row block
    put(ROW_WER, w_er)
    put(ROW_DW0T, dw0t)     # fan-in 4 -> rows 0..3 of an 8-row block
    put(ROW_DW1, dw1)
    put(ROW_DW2, dw2)       # out lanes 3 -> 128 zero-padded

    slab[ROW_BIAS + 0, :eb0.shape[0]] = eb0.astype(np.float32)
    slab[ROW_BIAS + 1, :eb1.shape[0]] = eb1.astype(np.float32)
    slab[ROW_BIAS + 2, :b0f.shape[0]] = b0f.astype(np.float32)
    slab[ROW_BIAS + 3, :db1.shape[0]] = db1.astype(np.float32)
    slab[ROW_BIAS + 4, :db2.shape[0]] = db2.astype(np.float32)

    return jnp.asarray(slab)


# ---------------------------------------------------------------------------
# Wrapper: one jit containing all prep (pads, agg, slice) + the pallas_call
# ---------------------------------------------------------------------------
@jax.jit
def cnp_forward(observation, target, observation_mask, wslab, log_std):
    """Returns (mean, std) exactly like CNP_w_seperateSTD.forward."""
    b, n_ctx, d_in = observation.shape
    _, n_tgt, d_x = target.shape

    obs_flat = jnp.pad(observation.reshape(b * n_ctx, d_in).astype(jnp.float32),
                       ((0, 0), (0, PAD_IN - d_in)))
    tgt_flat = jnp.pad(target.reshape(b * n_tgt, d_x).astype(jnp.float32),
                       ((0, 0), (0, PAD_IN - d_x)))

    if observation_mask is None:
        mask_scaled = jnp.full((b, n_ctx), 1.0 / n_ctx, jnp.float32)
    else:
        mask = observation_mask.astype(jnp.float32)
        # NOTE: an all-zero mask row divides by zero here (NaN/Inf), matching
        # the PyTorch reference behaviour — kept intentionally identical.
        mask_scaled = mask / mask.sum(axis=1, keepdims=True)

    # Block matrix A (b*n_tgt, b*n_ctx): A[bi*n_tgt+t, bj*n_ctx+c] =
    # (bi==bj) * mask_scaled[bi, c]  =>  A @ h == masked mean per batch,
    # already tiled over target rows; every row sums to 1 (required by the
    # ew2@dw0r fusion baked into the weight slab).
    eye_b = jnp.eye(b, dtype=jnp.float32)
    blk = eye_b[:, None, :, None] * mask_scaled[None, None, :, :]   # (b,1,b,n_ctx)
    agg = jnp.broadcast_to(blk, (b, n_tgt, b, n_ctx)).reshape(b * n_tgt, b * n_ctx)

    def full_spec(arr):
        return pl.BlockSpec(arr.shape, lambda i: (0, 0))

    args = (obs_flat, tgt_flat, agg, wslab)

    out = pl.pallas_call(
        cnp_kernel,
        out_shape=jax.ShapeDtypeStruct((b * n_tgt, LANE), jnp.float32),
        grid_spec=pltpu.PrefetchScalarGridSpec(
            num_scalar_prefetch=0,
            grid=(1,),                       # single step: no per-batch loop
            in_specs=[full_spec(a) for a in args],
            out_specs=pl.BlockSpec((b * n_tgt, LANE), lambda i: (0, 0)),
        ),
        compiler_params=pltpu.CompilerParams(
            dimension_semantics=("arbitrary",)),
    )(*args)

    mean = out[:, :D_Y].reshape(b, n_tgt, D_Y)
    std = jnp.exp(log_std)        # (d_y,) — separate learned std
    return mean, std


# ---------------------------------------------------------------------------
# Deterministic parameter init (mimics torch.nn.Linear default init)
# ---------------------------------------------------------------------------
def init_linear(key, fan_in, fan_out):
    kw, kb = jax.random.split(key)
    bound = 1.0 / np.sqrt(fan_in)
    w = jax.random.uniform(kw, (fan_in, fan_out), jnp.float32, -bound, bound)
    b = jax.random.uniform(kb, (fan_out,), jnp.float32, -bound, bound)
    return w, b


def build_params(key):
    enc_widths = [D_X + D_Y] + ENC_HIDDEN + [ENC_OUT]
    dec_widths = [ENC_OUT + D_X] + DEC_HIDDEN + [D_Y]
    params = []
    for fan_in, fan_out in zip(enc_widths[:-1], enc_widths[1:]):
        key, sub = jax.random.split(key)
        params.append(init_linear(sub, fan_in, fan_out))
    for fan_in, fan_out in zip(dec_widths[:-1], dec_widths[1:]):
        key, sub = jax.random.split(key)
        params.append(init_linear(sub, fan_in, fan_out))
    return params


# ---------------------------------------------------------------------------
# Pure-JAX reference (direct transcription of the PyTorch forward)
# ---------------------------------------------------------------------------
def ref_forward(observation, target, observation_mask, params, log_std):
    (ew0, eb0), (ew1, eb1), (ew2, eb2), (dw0, db0), (dw1, db1), (dw2, db2) = params
    h = jnp.tanh(observation @ ew0 + eb0)
    h = jnp.tanh(h @ ew1 + eb1)
    h = h @ ew2 + eb2
    if observation_mask is not None:
        h = (h * observation_mask[..., None]).sum(axis=1)
        r = h / observation_mask.sum(axis=1, keepdims=True)
    else:
        r = h.mean(axis=1)
    n_tgt = target.shape[1]
    r_tiled = jnp.repeat(r[:, None, :], n_tgt, axis=1)
    h_cat = jnp.concatenate([r_tiled, target], axis=-1)
    q = jnp.tanh(h_cat @ dw0 + db0)
    q = jnp.tanh(q @ dw1 + db1)
    q = q @ dw2 + db2
    mean = q[..., :D_Y]
    std = jnp.exp(log_std)
    return mean, std


# ---------------------------------------------------------------------------
if __name__ == "__main__":
    key = jax.random.PRNGKey(0)
    k_obs, k_tgt, k_par = jax.random.split(key, 3)

    observation = jax.random.normal(k_obs, (B, N_CTX, D_X + D_Y), jnp.float32)
    target = jax.random.normal(k_tgt, (B, N_TGT, D_X), jnp.float32)
    obs_mask = jnp.ones((B, N_CTX), jnp.float32)   # mask=None path (plain mean)

    params = build_params(k_par)
    wslab = pack_params(params)                    # one-time weight packing
    log_std = -0.5 * jnp.ones((D_Y,), jnp.float32)

    mean, std = cnp_forward(observation, target, obs_mask, wslab, log_std)
    mean = jax.block_until_ready(mean)
    std = jax.block_until_ready(std)

    ref_mean, ref_std = ref_forward(observation, target, obs_mask, params, log_std)

    assert mean.shape == (B, N_TGT, D_Y)
    assert std.shape == (D_Y,)
    np.testing.assert_allclose(np.asarray(mean), np.asarray(ref_mean),
                               rtol=1e-3, atol=1e-3)
    np.testing.assert_allclose(np.asarray(std), np.asarray(ref_std),
                               rtol=1e-6, atol=1e-6)

    print("KERNEL_OK")
</pallas_src>

<mosaic_0001>
module attributes {stable_mosaic.version = 11 : i64} {
  func.func @cnp_kernel(%arg0: i32, %arg1: memref<16x8xf32, #tpu.memory_space<vmem>>, %arg2: memref<16x8xf32, #tpu.memory_space<vmem>>, %arg3: memref<16x16xf32, #tpu.memory_space<vmem>>, %arg4: memref<536x128xf32, #tpu.memory_space<vmem>>, %arg5: memref<16x128xf32, #tpu.memory_space<vmem>>) attributes {dimension_semantics = [#tpu.dimension_semantics<arbitrary>], iteration_bounds = array<i64: 1>, scalar_prefetch = 0 : i64, scratch_operands = 0 : i64, tpu.core_type = #tpu.core_type<tc>, window_params = [{pipeline_mode = #tpu.pipeline_mode<synchronous>, transform_indices = @transform_0, window_bounds = array<i64: 16, 8>}, {pipeline_mode = #tpu.pipeline_mode<synchronous>, transform_indices = @transform_1, window_bounds = array<i64: 16, 8>}, {pipeline_mode = #tpu.pipeline_mode<synchronous>, transform_indices = @transform_2, window_bounds = array<i64: 16, 16>}, {pipeline_mode = #tpu.pipeline_mode<synchronous>, transform_indices = @transform_3, window_bounds = array<i64: 536, 128>}, {pipeline_mode = #tpu.pipeline_mode<synchronous>, transform_indices = @transform_4, window_bounds = array<i64: 16, 128>}]} {
    %c0 = arith.constant 0 : index
    %c0_0 = arith.constant 0 : index
    %0 = vector.load %arg1[%c0, %c0_0] : memref<16x8xf32, #tpu.memory_space<vmem>>, vector<16x8xf32>
    %c0_1 = arith.constant 0 : index
    %c0_2 = arith.constant 0 : index
    %1 = vector.load %arg2[%c0_1, %c0_2] : memref<16x8xf32, #tpu.memory_space<vmem>>, vector<16x8xf32>
    %c0_3 = arith.constant 0 : index
    %c0_4 = arith.constant 0 : index
    %2 = vector.load %arg3[%c0_3, %c0_4] : memref<16x16xf32, #tpu.memory_space<vmem>>, vector<16x16xf32>
    %c0_5 = arith.constant 0 : index
    %c0_6 = arith.constant 0 : index
    %3 = vector.load %arg4[%c0_5, %c0_6] : memref<536x128xf32, #tpu.memory_space<vmem>>, vector<8x128xf32>
    %c8 = arith.constant 8 : index
    %c0_7 = arith.constant 0 : index
    %4 = vector.load %arg4[%c8, %c0_7] : memref<536x128xf32, #tpu.memory_space<vmem>>, vector<128x128xf32>
    %c136 = arith.constant 136 : index
    %c0_8 = arith.constant 0 : index
    %5 = vector.load %arg4[%c136, %c0_8] : memref<536x128xf32, #tpu.memory_space<vmem>>, vector<128x128xf32>
    %c264 = arith.constant 264 : index
    %c0_9 = arith.constant 0 : index
    %6 = vector.load %arg4[%c264, %c0_9] : memref<536x128xf32, #tpu.memory_space<vmem>>, vector<8x128xf32>
    %c272 = arith.constant 272 : index
    %c0_10 = arith.constant 0 : index
    %7 = vector.load %arg4[%c272, %c0_10] : memref<536x128xf32, #tpu.memory_space<vmem>>, vector<128x128xf32>
    %c400 = arith.constant 400 : index
    %c0_11 = arith.constant 0 : index
    %8 = vector.load %arg4[%c400, %c0_11] : memref<536x128xf32, #tpu.memory_space<vmem>>, vector<128x128xf32>
    %c528 = arith.constant 528 : index
    %c0_12 = arith.constant 0 : index
    %9 = vector.load %arg4[%c528, %c0_12] : memref<536x128xf32, #tpu.memory_space<vmem>>, vector<1x128xf32>
    %c529 = arith.constant 529 : index
    %c0_13 = arith.constant 0 : index
    %10 = vector.load %arg4[%c529, %c0_13] : memref<536x128xf32, #tpu.memory_space<vmem>>, vector<1x128xf32>
    %c530 = arith.constant 530 : index
    %c0_14 = arith.constant 0 : index
    %11 = vector.load %arg4[%c530, %c0_14] : memref<536x128xf32, #tpu.memory_space<vmem>>, vector<1x128xf32>
    %c531 = arith.constant 531 : index
    %c0_15 = arith.constant 0 : index
    %12 = vector.load %arg4[%c531, %c0_15] : memref<536x128xf32, #tpu.memory_space<vmem>>, vector<1x128xf32>
    %c532 = arith.constant 532 : index
    %c0_16 = arith.constant 0 : index
    %13 = vector.load %arg4[%c532, %c0_16] : memref<536x128xf32, #tpu.memory_space<vmem>>, vector<1x128xf32>
    %cst = arith.constant dense<0.000000e+00> : vector<16x128xf32>
    %14 = tpu.matmul %0, %3, %cst {dimension_numbers = #tpu.dot_dimension_numbers<[1], [0], [0], [1], [0, 0, 1, 1], [], []>} : vector<16x8xf32>, vector<8x128xf32>, vector<16x128xf32> -> vector<16x128xf32>
    %15 = vector.broadcast %9 : vector<1x128xf32> to vector<16x128xf32>
    %16 = arith.addf %14, %15 : vector<16x128xf32>
    %17 = math.tanh %16 : vector<16x128xf32>
    %cst_17 = arith.constant dense<0.000000e+00> : vector<16x128xf32>
    %18 = tpu.matmul %17, %4, %cst_17 {dimension_numbers = #tpu.dot_dimension_numbers<[1], [0], [0], [1], [0, 0, 1, 1], [], []>} : vector<16x128xf32>, vector<128x128xf32>, vector<16x128xf32> -> vector<16x128xf32>
    %19 = vector.broadcast %10 : vector<1x128xf32> to vector<16x128xf32>
    %20 = arith.addf %18, %19 : vector<16x128xf32>
    %21 = math.tanh %20 : vector<16x128xf32>
    %cst_18 = arith.constant dense<0.000000e+00> : vector<16x128xf32>
    %22 = tpu.matmul %2, %21, %cst_18 {dimension_numbers = #tpu.dot_dimension_numbers<[1], [0], [0], [1], [0, 0, 1, 1], [], []>} : vector<16x16xf32>, vector<16x128xf32>, vector<16x128xf32> -> vector<16x128xf32>
    %cst_19 = arith.constant dense<0.000000e+00> : vector<16x128xf32>
    %23 = tpu.matmul %22, %5, %cst_19 {dimension_numbers = #tpu.dot_dimension_numbers<[1], [0], [0], [1], [0, 0, 1, 1], [], []>} : vector<16x128xf32>, vector<128x128xf32>, vector<16x128xf32> -> vector<16x128xf32>
    %cst_20 = arith.constant dense<0.000000e+00> : vector<16x128xf32>
    %24 = tpu.matmul %1, %6, %cst_20 {dimension_numbers = #tpu.dot_dimension_numbers<[1], [0], [0], [1], [0, 0, 1, 1], [], []>} : vector<16x8xf32>, vector<8x128xf32>, vector<16x128xf32> -> vector<16x128xf32>
    %25 = arith.addf %23, %24 : vector<16x128xf32>
    %26 = vector.broadcast %11 : vector<1x128xf32> to vector<16x128xf32>
    %27 = arith.addf %25, %26 : vector<16x128xf32>
    %28 = math.tanh %27 : vector<16x128xf32>
    %cst_21 = arith.constant dense<0.000000e+00> : vector<16x128xf32>
    %29 = tpu.matmul %28, %7, %cst_21 {dimension_numbers = #tpu.dot_dimension_numbers<[1], [0], [0], [1], [0, 0, 1, 1], [], []>} : vector<16x128xf32>, vector<128x128xf32>, vector<16x128xf32> -> vector<16x128xf32>
    %30 = vector.broadcast %12 : vector<1x128xf32> to vector<16x128xf32>
    %31 = arith.addf %29, %30 : vector<16x128xf32>
    %32 = math.tanh %31 : vector<16x128xf32>
    %cst_22 = arith.constant dense<0.000000e+00> : vector<16x128xf32>
    %33 = tpu.matmul %32, %8, %cst_22 {dimension_numbers = #tpu.dot_dimension_numbers<[1], [0], [0], [1], [0, 0, 1, 1], [], []>} : vector<16x128xf32>, vector<128x128xf32>, vector<16x128xf32> -> vector<16x128xf32>
    %34 = vector.broadcast %13 : vector<1x128xf32> to vector<16x128xf32>
    %35 = arith.addf %33, %34 : vector<16x128xf32>
    %c0_23 = arith.constant 0 : index
    %c0_24 = arith.constant 0 : index
    %36 = vector.load %arg5[%c0_23, %c0_24] : memref<16x128xf32, #tpu.memory_space<vmem>>, vector<16x128xf32>
    tpu.vector_store %arg5[%c0_23, %c0_24], %35 {strides = array<i32>} : memref<16x128xf32, #tpu.memory_space<vmem>>, vector<16x128xf32>,
    return
  }
  func.func @transform_0(%arg0: i32) -> (i32, i32) {
    %c0_i32 = arith.constant 0 : i32
    %c0_i32_0 = arith.constant 0 : i32
    %c0_i32_1 = arith.constant 0 : i32
    return %c0_i32, %c0_i32_0 : i32, i32
  }
  func.func @transform_1(%arg0: i32) -> (i32, i32) {
    %c0_i32 = arith.constant 0 : i32
    %c0_i32_0 = arith.constant 0 : i32
    %c0_i32_1 = arith.constant 0 : i32
    return %c0_i32, %c0_i32_0 : i32, i32
  }
  func.func @transform_2(%arg0: i32) -> (i32, i32) {
    %c0_i32 = arith.constant 0 : i32
    %c0_i32_0 = arith.constant 0 : i32
    %c0_i32_1 = arith.constant 0 : i32
    return %c0_i32, %c0_i32_0 : i32, i32
  }
  func.func @transform_3(%arg0: i32) -> (i32, i32) {
    %c0_i32 = arith.constant 0 : i32
    %c0_i32_0 = arith.constant 0 : i32
    %c0_i32_1 = arith.constant 0 : i32
    return %c0_i32, %c0_i32_0 : i32, i32
  }
  func.func @transform_4(%arg0: i32) -> (i32, i32) {
    %c0_i32 = arith.constant 0 : i32
    %c0_i32_0 = arith.constant 0 : i32
    %c0_i32_1 = arith.constant 0 : i32
    return %c0_i32, %c0_i32_0 : i32, i32
  }
}

</mosaic_0001>

<llo_original>
// kernel: cnp_forward.1
$region0: #{cnp_forward.1}
  #allocation0 [shape = 'u32[]', space=smem, size = 0x4, offset = 0x4, fixed_abs, tag = 'smem constant byte address 0x4 - core index']
  #allocation1 [shape = 'u32[144,128]{1,0:T(1,128)}', space=vmem, size = 0x12000, scoped, tag = 'internal scratch']
  %s0 = inlined_call_operand.vmem [shape: f32[16,8], index: 0, kind: input, shape index: {}]
  %s1 = inlined_call_operand.vmem [shape: f32[16,8], index: 1, kind: input, shape index: {}]
  %s2 = inlined_call_operand.vmem [shape: f32[16,16], index: 2, kind: input, shape index: {}]
  %s3 = inlined_call_operand.hbm [shape: f32[536,128], index: 3, kind: input, shape index: {}]
  %s4 = inlined_call_operand.vmem [shape: f32[16,128], index: 4, kind: output, shape index: {}]
  %s5 = sld [smem:[#allocation0]]
  $region30: #{cnp_forward.1} parent=0
    _
  %s7 = ssub.s32 1, %s5
  %s8 = scalar_select 0, %s7, %s5
  $region1: #{cnp_forward.1} parent=0
    #allocation2 [shape = 'u8[274432]{0}', space=vmem, size = 0x43000, scoped, tag = 'input window, operand 3, single buffered']
    #allocation3 [shape = 's32[1]{0}', space=sflag, size = 0x4, scoped, tag = 'scoped memory for cnp_forward.1']
    %9 = vsyncpa [#allocation3], 0
    // Predicated region
    $region2: #{cnp_forward.1} parent=1 // pred_check
      _
    $region3: #{cnp_forward.1} parent=1 // pred_check_branch
      %11 = sbr.rel (0) target = $region5
    $region4: #{cnp_forward.1} parent=1 // pred_region
      _
    $region5: #{cnp_forward.1} parent=1 // pred_fallthru
      _
    // Predicated region
    $region6: #{cnp_forward.1} parent=1 // pred_check
      _
    $region7: #{cnp_forward.1} parent=1 // pred_check_branch
      %13 = sbr.rel (0) target = $region9
    $region8: #{cnp_forward.1} parent=1 // pred_region
      _
    $region9: #{cnp_forward.1} parent=1 // pred_fallthru
      _
    // Predicated region
    $region10: #{cnp_forward.1} parent=1 // pred_check
      _
    $region11: #{cnp_forward.1} parent=1 // pred_check_branch
      %15 = sbr.rel (0) target = $region13
    $region12: #{cnp_forward.1} parent=1 // pred_region
      _
    $region13: #{cnp_forward.1} parent=1 // pred_fallthru
      _
    // Predicated region
    $region14: #{cnp_forward.1} parent=1 // pred_check
      _
    $region15: #{cnp_forward.1} parent=1 // pred_check_branch
      %17 = sbr.rel (0) target = $region17
    $region16: #{cnp_forward.1} parent=1 // pred_region
      %s19 = ssub.s32 8576, 8576
      %20 = vsyncadd [#allocation3], %s19
      %s21 = sshll.u32 [#allocation2], 4
      %s22 = int_to_ptr.vmem [resolvable:$true] %s21
      %27 = dma.hbm_to_vmem [thread:$0]  %s3, 8576, %s22, [#allocation3], 128, 128, 8
    $region17: #{cnp_forward.1} parent=1 // pred_fallthru
      _
    // Predicated region
    $region18: #{cnp_forward.1} parent=1 // pred_check
      _
    $region19: #{cnp_forward.1} parent=1 // pred_check_branch
      %29 = sbr.rel (0) target = $region21
    $region20: #{cnp_forward.1} parent=1 // pred_region
      %30 = dma.done [#allocation3], 8576
    $region21: #{cnp_forward.1} parent=1 // pred_fallthru
      _
    %v31 = vld [vmem:[%s0] sm:$0xff]
    %v32 = vld [vmem:[%s0 + $0x8] sm:$0xff]
    %v33 = vld [vmem:[%s1] sm:$0xff]
    %v34 = vld [vmem:[%s1 + $0x8] sm:$0xff]
    %v35 = vld [vmem:[%s2] sm:$0xff]
    %v36 = vld [vmem:[%s2 + $0x8] sm:$0xff]
    %v37 = vld [vmem:[#allocation2] sm:$0xff]
    %v38 = vld [vmem:[#allocation2 + $0x8] sm:$0xff]
    %v39 = vld [vmem:[#allocation2 + $0x10] sm:$0xff]
    %v40 = vld [vmem:[#allocation2 + $0x18] sm:$0xff]
    %v41 = vld [vmem:[#allocation2 + $0x20] sm:$0xff]
    %v42 = vld [vmem:[#allocation2 + $0x28] sm:$0xff]
    %v43 = vld [vmem:[#allocation2 + $0x30] sm:$0xff]
    %v44 = vld [vmem:[#allocation2 + $0x38] sm:$0xff]
    %v45 = vld [vmem:[#allocation2 + $0x40] sm:$0xff]
    %v46 = vld [vmem:[#allocation2 + $0x48] sm:$0xff]
    %v47 = vld [vmem:[#allocation2 + $0x50] sm:$0xff]
    %v48 = vld [vmem:[#allocation2 + $0x58] sm:$0xff]
    %v49 = vld [vmem:[#allocation2 + $0x60] sm:$0xff]
    %v50 = vld [vmem:[#allocation2 + $0x68] sm:$0xff]
    %v51 = vld [vmem:[#allocation2 + $0x70] sm:$0xff]
    %v52 = vld [vmem:[#allocation2 + $0x78] sm:$0xff]
    %v53 = vld [vmem:[#allocation2 + $0x80] sm:$0xff]
    %v54 = vld [vmem:[#allocation2 + $0x88] sm:$0xff]
    %v55 = vld [vmem:[#allocation2 + $0x90] sm:$0xff]
    %v56 = vld [vmem:[#allocation2 + $0x98] sm:$0xff]
    %v57 = vld [vmem:[#allocation2 + $0xa0] sm:$0xff]
    %v58 = vld [vmem:[#allocation2 + $0xa8] sm:$0xff]
    %v59 = vld [vmem:[#allocation2 + $0xb0] sm:$0xff]
    %v60 = vld [vmem:[#allocation2 + $0xb8] sm:$0xff]
    %v61 = vld [vmem:[#allocation2 + $0xc0] sm:$0xff]
    %v62 = vld [vmem:[#allocation2 + $0xc8] sm:$0xff]
    %v63 = vld [vmem:[#allocation2 + $0xd0] sm:$0xff]
    %v64 = vld [vmem:[#allocation2 + $0xd8] sm:$0xff]
    %v65 = vld [vmem:[#allocation2 + $0xe0] sm:$0xff]
    %v66 = vld [vmem:[#allocation2 + $0xe8] sm:$0xff]
    %v67 = vld [vmem:[#allocation2 + $0xf0] sm:$0xff]
    %v68 = vld [vmem:[#allocation2 + $0xf8] sm:$0xff]
    %v69 = vld [vmem:[#allocation2 + $0x100] sm:$0xff]
    %v70 = vld [vmem:[#allocation2 + $0x108] sm:$0xff]
    %v71 = vld [vmem:[#allocation2 + $0x110] sm:$0xff]
    %v72 = vld [vmem:[#allocation2 + $0x118] sm:$0xff]
    %v73 = vld [vmem:[#allocation2 + $0x120] sm:$0xff]
    %v74 = vld [vmem:[#allocation2 + $0x128] sm:$0xff]
    %v75 = vld [vmem:[#allocation2 + $0x130] sm:$0xff]
    %v76 = vld [vmem:[#allocation2 + $0x138] sm:$0xff]
    %v77 = vld [vmem:[#allocation2 + $0x140] sm:$0xff]
    %v78 = vld [vmem:[#allocation2 + $0x148] sm:$0xff]
    %v79 = vld [vmem:[#allocation2 + $0x150] sm:$0xff]
    %v80 = vld [vmem:[#allocation2 + $0x158] sm:$0xff]
    %v81 = vld [vmem:[#allocation2 + $0x160] sm:$0xff]
    %v82 = vld [vmem:[#allocation2 + $0x168] sm:$0xff]
    %v83 = vld [vmem:[#allocation2 + $0x170] sm:$0xff]
    %v84 = vld [vmem:[#allocation2 + $0x178] sm:$0xff]
    %v85 = vld [vmem:[#allocation2 + $0x180] sm:$0xff]
    %v86 = vld [vmem:[#allocation2 + $0x188] sm:$0xff]
    %v87 = vld [vmem:[#allocation2 + $0x190] sm:$0xff]
    %v88 = vld [vmem:[#allocation2 + $0x198] sm:$0xff]
    %v89 = vld [vmem:[#allocation2 + $0x1a0] sm:$0xff]
    %v90 = vld [vmem:[#allocation2 + $0x1a8] sm:$0xff]
    %v91 = vld [vmem:[#allocation2 + $0x1b0] sm:$0xff]
    %v92 = vld [vmem:[#allocation2 + $0x1b8] sm:$0xff]
    %v93 = vld [vmem:[#allocation2 + $0x1c0] sm:$0xff]
    %v94 = vld [vmem:[#allocation2 + $0x1c8] sm:$0xff]
    %v95 = vld [vmem:[#allocation2 + $0x1d0] sm:$0xff]
    %v96 = vld [vmem:[#allocation2 + $0x1d8] sm:$0xff]
    %v97 = vld [vmem:[#allocation2 + $0x1e0] sm:$0xff]
    %v98 = vld [vmem:[#allocation2 + $0x1e8] sm:$0xff]
    %v99 = vld [vmem:[#allocation2 + $0x1f0] sm:$0xff]
    %v100 = vld [vmem:[#allocation2 + $0x1f8] sm:$0xff]
    %v101 = vld [vmem:[#allocation2 + $0x200] sm:$0xff]
    %v102 = vld [vmem:[#allocation2 + $0x208] sm:$0xff]
    %v103 = vld [vmem:[#allocation2 + $0x210] sm:$0x1]
    %v104 = vld [vmem:[#allocation2 + $0x211] sm:$0x1]
    %v105 = vld [vmem:[#allocation2 + $0x212] sm:$0x1]
    %v106 = vld [vmem:[#allocation2 + $0x213] sm:$0x1]
    %v107 = vld [vmem:[#allocation2 + $0x214] sm:$0x1]
    %v108 = vlaneseq
    %v109 = vshrl.u32 %v108, 7
    %v110 = vsub.s32 0, %v109
    %v111 = vrot.slane %v103, %v110
    %vm112 = vcmask 64512
    %v114 = vsel %vm112, %v31, 0
    %v117 = vsel %vm112, %v32, 0
    %119 = vmatprep.subr.mxu0 0.0
    %120 = vmatpush1.msra.mxu0 %v37
    %121 = vmatprep.subr.mxu0 0.0
    %122 = vmatpush1.msra.mxu0 0.0
    %123 = vmatprep.subr.mxu0 0.0
    %124 = vmatpush1.msra.mxu0 0.0
    %125 = vmatprep.subr.mxu0 0.0
    %126 = vmatpush1.msra.mxu0 0.0
    %127 = vmatprep.subr.mxu0 0.0
    %128 = vmatpush1.msra.mxu0 0.0
    %129 = vmatprep.subr.mxu0 0.0
    %130 = vmatpush1.msra.mxu0 0.0
    %131 = vmatprep.subr.mxu0 0.0
    %132 = vmatpush1.msra.mxu0 0.0
    %133 = vmatprep.subr.mxu0 0.0
    %134 = vmatpush1.msra.mxu0 0.0
    %135 = vmatprep.subr.mxu0 0.0
    %136 = vmatpush1.msra.mxu0 0.0
    %137 = vmatprep.subr.mxu0 0.0
    %138 = vmatpush1.msra.mxu0 0.0
    %139 = vmatprep.subr.mxu0 0.0
    %140 = vmatpush1.msra.mxu0 0.0
    %141 = vmatprep.subr.mxu0 0.0
    %142 = vmatpush1.msra.mxu0 0.0
    %143 = vmatprep.subr.mxu0 0.0
    %144 = vmatpush1.msra.mxu0 0.0
    %145 = vmatprep.subr.mxu0 0.0
    %146 = vmatpush1.msra.mxu0 0.0
    %147 = vmatprep.subr.mxu0 0.0
    %148 = vmatpush1.msra.mxu0 0.0
    %149 = vmatprep.subr.mxu0 0.0
    %150 = vmatpush1.msra.mxu0 0.0
    %151 = vmatprep.subr.mxu0 0.0
    %152 = vmatpush1.msra.mxu0 0.0
    %153 = vmatprep.subr.mxu0 0.0
    %154 = vmatpush1.msra.mxu0 0.0
    %155 = vmatprep.subr.mxu0 0.0
    %156 = vmatpush1.msra.mxu0 0.0
    %157 = vmatprep.subr.mxu0 0.0
    %158 = vmatpush1.msra.mxu0 0.0
    %159 = vmatprep.subr.mxu0 0.0
    %160 = vmatpush1.msra.mxu0 0.0
    %161 = vmatprep.subr.mxu0 0.0
    %162 = vmatpush1.msra.mxu0 0.0
    %163 = vmatprep.subr.mxu0 0.0
    %164 = vmatpush1.msra.mxu0 0.0
    %165 = vmatprep.subr.mxu0 0.0
    %166 = vmatpush1.msra.mxu0 0.0
    %167 = vmatprep.subr.mxu0 0.0
    %168 = vmatpush1.msra.mxu0 0.0
    %169 = vmatprep.subr.mxu0 0.0
    %170 = vmatpush1.msra.mxu0 0.0
    %171 = vmatprep.subr.mxu0 0.0
    %172 = vmatpush1.msra.mxu0 0.0
    %173 = vmatprep.subr.mxu0 0.0
    %174 = vmatpush1.msra.mxu0 0.0
    %175 = vmatprep.subr.mxu0 0.0
    %176 = vmatpush1.msra.mxu0 0.0
    %177 = vmatprep.subr.mxu0 0.0
    %178 = vmatpush1.msra.mxu0 0.0
    %179 = vmatprep.subr.mxu0 0.0
    %180 = vmatpush1.msra.mxu0 0.0
    %181 = vmatprep.subr.mxu0 0.0
    %182 = vmatpush1.msra.mxu0 0.0
    %183 = vmatprep.mubr.f32.mxu0 0.0
    %184 = vmatmul.mubr.f32.gmra.mrb[0].mxu0 %v114
    %v185 = vpop.f32.mrb[0].mxu0
    %v186 = vadd.f32 %v111, %v185
    %v187 = vpop.f32.mrb[0].mxu0
    %188 = vmatprep.mubr.f32.mxu0 0.0
    %189 = vmatmul.mubr.f32.gmra.mrb[0].mxu0 %v117
    %v190 = vpop.f32.mrb[0].mxu0
    %v191 = vadd.f32 %v111, %v190
    %v192 = vpop.f32.mrb[0].mxu0
    %193 = vdwg.mxu0
    %v194 = vtanh.pop %v186
    %v195 = vtanh.pop %v191
    %v196 = vlaneseq
    %v197 = vshrl.u32 %v196, 7
    %v198 = vsub.s32 0, %v197
    %v199 = vrot.slane %v104, %v198
    %200 = vmatprep.subr.mxu0 0.0
    %201 = vmatpush1.msra.mxu0 %v38
    %202 = vmatprep.subr.mxu0 0.0
    %203 = vmatpush1.msra.mxu0 %v39
    %204 = vmatprep.subr.mxu0 0.0
    %205 = vmatpush1.msra.mxu0 %v40
    %206 = vmatprep.subr.mxu0 0.0
    %207 = vmatpush1.msra.mxu0 %v41
    %208 = vmatprep.subr.mxu0 0.0
    %209 = vmatpush1.msra.mxu0 %v42
    %210 = vmatprep.subr.mxu0 0.0
    %211 = vmatpush1.msra.mxu0 %v43
    %212 = vmatprep.subr.mxu0 0.0
    %213 = vmatpush1.msra.mxu0 %v44
    %214 = vmatprep.subr.mxu0 0.0
    %215 = vmatpush1.msra.mxu0 %v45
    %216 = vmatprep.subr.mxu0 0.0
    %217 = vmatpush1.msra.mxu0 %v46
    %218 = vmatprep.subr.mxu0 0.0
    %219 = vmatpush1.msra.mxu0 %v47
    %220 = vmatprep.subr.mxu0 0.0
    %221 = vmatpush1.msra.mxu0 %v48
    %222 = vmatprep.subr.mxu0 0.0
    %223 = vmatpush1.msra.mxu0 %v49
    %224 = vmatprep.subr.mxu0 0.0
    %225 = vmatpush1.msra.mxu0 %v50
    %226 = vmatprep.subr.mxu0 0.0
    %227 = vmatpush1.msra.mxu0 %v51
    %228 = vmatprep.subr.mxu0 0.0
    %229 = vmatpush1.msra.mxu0 %v52
    %230 = vmatprep.subr.mxu0 0.0
    %231 = vmatpush1.msra.mxu0 %v53
    %232 = vmatprep.subr.mxu0 0.0
    %233 = vmatpush1.msra.mxu0 0.0
    %234 = vmatprep.subr.mxu0 0.0
    %235 = vmatpush1.msra.mxu0 0.0
    %236 = vmatprep.subr.mxu0 0.0
    %237 = vmatpush1.msra.mxu0 0.0
    %238 = vmatprep.subr.mxu0 0.0
    %239 = vmatpush1.msra.mxu0 0.0
    %240 = vmatprep.subr.mxu0 0.0
    %241 = vmatpush1.msra.mxu0 0.0
    %242 = vmatprep.subr.mxu0 0.0
    %243 = vmatpush1.msra.mxu0 0.0
    %244 = vmatprep.subr.mxu0 0.0
    %245 = vmatpush1.msra.mxu0 0.0
    %246 = vmatprep.subr.mxu0 0.0
    %247 = vmatpush1.msra.mxu0 0.0
    %248 = vmatprep.subr.mxu0 0.0
    %249 = vmatpush1.msra.mxu0 0.0
    %250 = vmatprep.subr.mxu0 0.0
    %251 = vmatpush1.msra.mxu0 0.0
    %252 = vmatprep.subr.mxu0 0.0
    %253 = vmatpush1.msra.mxu0 0.0
    %254 = vmatprep.subr.mxu0 0.0
    %255 = vmatpush1.msra.mxu0 0.0
    %256 = vmatprep.subr.mxu0 0.0
    %257 = vmatpush1.msra.mxu0 0.0
    %258 = vmatprep.subr.mxu0 0.0
    %259 = vmatpush1.msra.mxu0 0.0
    %260 = vmatprep.subr.mxu0 0.0
    %261 = vmatpush1.msra.mxu0 0.0
    %262 = vmatprep.subr.mxu0 0.0
    %263 = vmatpush1.msra.mxu0 0.0
    %264 = vmatprep.mubr.f32.mxu0 0.0
    %265 = vmatmul.mubr.f32.gmra.mrb[0].mxu0 %v194
    %v266 = vpop.f32.mrb[0].mxu0
    %v267 = vadd.f32 %v199, %v266
    %v268 = vpop.f32.mrb[0].mxu0
    %269 = vmatprep.mubr.f32.mxu0 0.0
    %270 = vmatmul.mubr.f32.gmra.mrb[0].mxu0 %v195
    %v271 = vpop.f32.mrb[0].mxu0
    %v272 = vadd.f32 %v199, %v271
    %v273 = vpop.f32.mrb[0].mxu0
    %274 = vdwg.mxu0
    %v275 = vtanh.pop %v267
    %v276 = vtanh.pop %v272
    %vm277 = vcmask 130048
    %v279 = vsel %vm277, %v35, 0
    %v282 = vsel %vm277, %v36, 0
    %284 = vmatprep.subr.mxu0 0.0
    %285 = vmatpush1.msra.mxu0 %v275
    %286 = vmatprep.subr.mxu0 0.0
    %287 = vmatpush1.msra.mxu0 %v276
    %288 = vmatprep.subr.mxu0 0.0
    %289 = vmatpush1.msra.mxu0 0.0
    %290 = vmatprep.subr.mxu0 0.0
    %291 = vmatpush1.msra.mxu0 0.0
    %292 = vmatprep.subr.mxu0 0.0
    %293 = vmatpush1.msra.mxu0 0.0
    %294 = vmatprep.subr.mxu0 0.0
    %295 = vmatpush1.msra.mxu0 0.0
    %296 = vmatprep.subr.mxu0 0.0
    %297 = vmatpush1.msra.mxu0 0.0
    %298 = vmatprep.subr.mxu0 0.0
    %299 = vmatpush1.msra.mxu0 0.0
    %300 = vmatprep.subr.mxu0 0.0
    %301 = vmatpush1.msra.mxu0 0.0
    %302 = vmatprep.subr.mxu0 0.0
    %303 = vmatpush1.msra.mxu0 0.0
    %304 = vmatprep.subr.mxu0 0.0
    %305 = vmatpush1.msra.mxu0 0.0
    %306 = vmatprep.subr.mxu0 0.0
    %307 = vmatpush1.msra.mxu0 0.0
    %308 = vmatprep.subr.mxu0 0.0
    %309 = vmatpush1.msra.mxu0 0.0
    %310 = vmatprep.subr.mxu0 0.0
    %311 = vmatpush1.msra.mxu0 0.0
    %312 = vmatprep.subr.mxu0 0.0
    %313 = vmatpush1.msra.mxu0 0.0
    %314 = vmatprep.subr.mxu0 0.0
    %315 = vmatpush1.msra.mxu0 0.0
    %316 = vmatprep.subr.mxu0 0.0
    %317 = vmatpush1.msra.mxu0 0.0
    %318 = vmatprep.subr.mxu0 0.0
    %319 = vmatpush1.msra.mxu0 0.0
    %320 = vmatprep.subr.mxu0 0.0
    %321 = vmatpush1.msra.mxu0 0.0
    %322 = vmatprep.subr.mxu0 0.0
    %323 = vmatpush1.msra.mxu0 0.0
    %324 = vmatprep.subr.mxu0 0.0
    %325 = vmatpush1.msra.mxu0 0.0
    %326 = vmatprep.subr.mxu0 0.0
    %327 = vmatpush1.msra.mxu0 0.0
    %328 = vmatprep.subr.mxu0 0.0
    %329 = vmatpush1.msra.mxu0 0.0
    %330 = vmatprep.subr.mxu0 0.0
    %331 = vmatpush1.msra.mxu0 0.0
    %332 = vmatprep.subr.mxu0 0.0
    %333 = vmatpush1.msra.mxu0 0.0
    %334 = vmatprep.subr.mxu0 0.0
    %335 = vmatpush1.msra.mxu0 0.0
    %336 = vmatprep.subr.mxu0 0.0
    %337 = vmatpush1.msra.mxu0 0.0
    %338 = vmatprep.subr.mxu0 0.0
    %339 = vmatpush1.msra.mxu0 0.0
    %340 = vmatprep.subr.mxu0 0.0
    %341 = vmatpush1.msra.mxu0 0.0
    %342 = vmatprep.subr.mxu0 0.0
    %343 = vmatpush1.msra.mxu0 0.0
    %344 = vmatprep.subr.mxu0 0.0
    %345 = vmatpush1.msra.mxu0 0.0
    %346 = vmatprep.subr.mxu0 0.0
    %347 = vmatpush1.msra.mxu0 0.0
    %348 = vmatprep.mubr.f32.mxu0 0.0
    %349 = vmatmul.mubr.f32.gmra.mrb[0].mxu0 %v279
    %v350 = vpop.f32.mrb[0].mxu0
    %v351 = vadd.f32 0.0, %v350
    %v352 = vpop.f32.mrb[0].mxu0
    %353 = vmatprep.mubr.f32.mxu0 0.0
    %354 = vmatmul.mubr.f32.gmra.mrb[0].mxu0 %v282
    %v355 = vpop.f32.mrb[0].mxu0
    %v356 = vadd.f32 0.0, %v355
    %v357 = vpop.f32.mrb[0].mxu0
    %358 = vdwg.mxu0
    %v360 = vsel %vm112, %v33, 0
    %v363 = vsel %vm112, %v34, 0
    %365 = vmatprep.subr.mxu0 0.0
    %366 = vmatpush1.msra.mxu0 %v70
    %367 = vmatprep.subr.mxu0 0.0
    %368 = vmatpush1.msra.mxu0 0.0
    %369 = vmatprep.subr.mxu0 0.0
    %370 = vmatpush1.msra.mxu0 0.0
    %371 = vmatprep.subr.mxu0 0.0
    %372 = vmatpush1.msra.mxu0 0.0
    %373 = vmatprep.subr.mxu0 0.0
    %374 = vmatpush1.msra.mxu0 0.0
    %375 = vmatprep.subr.mxu0 0.0
    %376 = vmatpush1.msra.mxu0 0.0
    %377 = vmatprep.subr.mxu0 0.0
    %378 = vmatpush1.msra.mxu0 0.0
    %379 = vmatprep.subr.mxu0 0.0
    %380 = vmatpush1.msra.mxu0 0.0
    %381 = vmatprep.subr.mxu0 0.0
    %382 = vmatpush1.msra.mxu0 0.0
    %383 = vmatprep.subr.mxu0 0.0
    %384 = vmatpush1.msra.mxu0 0.0
    %385 = vmatprep.subr.mxu0 0.0
    %386 = vmatpush1.msra.mxu0 0.0
    %387 = vmatprep.subr.mxu0 0.0
    %388 = vmatpush1.msra.mxu0 0.0
    %389 = vmatprep.subr.mxu0 0.0
    %390 = vmatpush1.msra.mxu0 0.0
    %391 = vmatprep.subr.mxu0 0.0
    %392 = vmatpush1.msra.mxu0 0.0
    %393 = vmatprep.subr.mxu0 0.0
    %394 = vmatpush1.msra.mxu0 0.0
    %395 = vmatprep.subr.mxu0 0.0
    %396 = vmatpush1.msra.mxu0 0.0
    %397 = vmatprep.subr.mxu0 0.0
    %398 = vmatpush1.msra.mxu0 0.0
    %399 = vmatprep.subr.mxu0 0.0
    %400 = vmatpush1.msra.mxu0 0.0
    %401 = vmatprep.subr.mxu0 0.0
    %402 = vmatpush1.msra.mxu0 0.0
    %403 = vmatprep.subr.mxu0 0.0
    %404 = vmatpush1.msra.mxu0 0.0
    %405 = vmatprep.subr.mxu0 0.0
    %406 = vmatpush1.msra.mxu0 0.0
    %407 = vmatprep.subr.mxu0 0.0
    %408 = vmatpush1.msra.mxu0 0.0
    %409 = vmatprep.subr.mxu0 0.0
    %410 = vmatpush1.msra.mxu0 0.0
    %411 = vmatprep.subr.mxu0 0.0
    %412 = vmatpush1.msra.mxu0 0.0
    %413 = vmatprep.subr.mxu0 0.0
    %414 = vmatpush1.msra.mxu0 0.0
    %415 = vmatprep.subr.mxu0 0.0
    %416 = vmatpush1.msra.mxu0 0.0
    %417 = vmatprep.subr.mxu0 0.0
    %418 = vmatpush1.msra.mxu0 0.0
    %419 = vmatprep.subr.mxu0 0.0
    %420 = vmatpush1.msra.mxu0 0.0
    %421 = vmatprep.subr.mxu0 0.0
    %422 = vmatpush1.msra.mxu0 0.0
    %423 = vmatprep.subr.mxu0 0.0
    %424 = vmatpush1.msra.mxu0 0.0
    %425 = vmatprep.subr.mxu0 0.0
    %426 = vmatpush1.msra.mxu0 0.0
    %427 = vmatprep.subr.mxu0 0.0
    %428 = vmatpush1.msra.mxu0 0.0
    %429 = vmatprep.mubr.f32.mxu0 0.0
    %430 = vmatmul.mubr.f32.gmra.mrb[0].mxu0 %v360
    %v431 = vpop.f32.mrb[0].mxu0
    %v432 = vadd.f32 0.0, %v431
    %v433 = vpop.f32.mrb[0].mxu0
    %434 = vmatprep.mubr.f32.mxu0 0.0
    %435 = vmatmul.mubr.f32.gmra.mrb[0].mxu0 %v363
    %v436 = vpop.f32.mrb[0].mxu0
    %v437 = vadd.f32 0.0, %v436
    %v438 = vpop.f32.mrb[0].mxu0
    %439 = vdwg.mxu0
    %440 = vmatprep.subr.mxu0 0.0
    %441 = vmatpush1.msra.mxu0 %v54
    %442 = vmatprep.subr.mxu0 0.0
    %443 = vmatpush1.msra.mxu0 %v55
    %444 = vmatprep.subr.mxu0 0.0
    %445 = vmatpush1.msra.mxu0 %v56
    %446 = vmatprep.subr.mxu0 0.0
    %447 = vmatpush1.msra.mxu0 %v57
    %448 = vmatprep.subr.mxu0 0.0
    %449 = vmatpush1.msra.mxu0 %v58
    %450 = vmatprep.subr.mxu0 0.0
    %451 = vmatpush1.msra.mxu0 %v59
    %452 = vmatprep.subr.mxu0 0.0
    %453 = vmatpush1.msra.mxu0 %v60
    %454 = vmatprep.subr.mxu0 0.0
    %455 = vmatpush1.msra.mxu0 %v61
    %456 = vmatprep.subr.mxu0 0.0
    %457 = vmatpush1.msra.mxu0 %v62
    %458 = vmatprep.subr.mxu0 0.0
    %459 = vmatpush1.msra.mxu0 %v63
    %460 = vmatprep.subr.mxu0 0.0
    %461 = vmatpush1.msra.mxu0 %v64
    %462 = vmatprep.subr.mxu0 0.0
    %463 = vmatpush1.msra.mxu0 %v65
    %464 = vmatprep.subr.mxu0 0.0
    %465 = vmatpush1.msra.mxu0 %v66
    %466 = vmatprep.subr.mxu0 0.0
    %467 = vmatpush1.msra.mxu0 %v67
    %468 = vmatprep.subr.mxu0 0.0
    %469 = vmatpush1.msra.mxu0 %v68
    %470 = vmatprep.subr.mxu0 0.0
    %471 = vmatpush1.msra.mxu0 %v69
    %472 = vmatprep.subr.mxu0 0.0
    %473 = vmatpush1.msra.mxu0 0.0
    %474 = vmatprep.subr.mxu0 0.0
    %475 = vmatpush1.msra.mxu0 0.0
    %476 = vmatprep.subr.mxu0 0.0
    %477 = vmatpush1.msra.mxu0 0.0
    %478 = vmatprep.subr.mxu0 0.0
    %479 = vmatpush1.msra.mxu0 0.0
    %480 = vmatprep.subr.mxu0 0.0
    %481 = vmatpush1.msra.mxu0 0.0
    %482 = vmatprep.subr.mxu0 0.0
    %483 = vmatpush1.msra.mxu0 0.0
    %484 = vmatprep.subr.mxu0 0.0
    %485 = vmatpush1.msra.mxu0 0.0
    %486 = vmatprep.subr.mxu0 0.0
    %487 = vmatpush1.msra.mxu0 0.0
    %488 = vmatprep.subr.mxu0 0.0
    %489 = vmatpush1.msra.mxu0 0.0
    %490 = vmatprep.subr.mxu0 0.0
    %491 = vmatpush1.msra.mxu0 0.0
    %492 = vmatprep.subr.mxu0 0.0
    %493 = vmatpush1.msra.mxu0 0.0
    %494 = vmatprep.subr.mxu0 0.0
    %495 = vmatpush1.msra.mxu0 0.0
    %496 = vmatprep.subr.mxu0 0.0
    %497 = vmatpush1.msra.mxu0 0.0
    %498 = vmatprep.subr.mxu0 0.0
    %499 = vmatpush1.msra.mxu0 0.0
    %500 = vmatprep.subr.mxu0 0.0
    %501 = vmatpush1.msra.mxu0 0.0
    %502 = vmatprep.subr.mxu0 0.0
    %503 = vmatpush1.msra.mxu0 0.0
    %504 = vmatprep.mubr.f32.mxu0 0.0
    %505 = vmatmul.mubr.f32.gmra.mrb[0].mxu0 %v351
    %v506 = vpop.f32.mrb[0].mxu0
    %v507 = vadd.f32 %v432, %v506
    %v508 = vpop.f32.mrb[0].mxu0
    %509 = vmatprep.mubr.f32.mxu0 0.0
    %510 = vmatmul.mubr.f32.gmra.mrb[0].mxu0 %v356
    %v511 = vpop.f32.mrb[0].mxu0
    %v512 = vadd.f32 %v437, %v511
    %v513 = vpop.f32.mrb[0].mxu0
    %514 = vdwg.mxu0
    %v515 = vlaneseq
    %v516 = vshrl.u32 %v515, 7
    %v517 = vsub.s32 0, %v516
    %v518 = vrot.slane %v105, %v517
    %v519 = vadd.f32 %v507, %v518
    %v520 = vadd.f32 %v512, %v518
    %v521 = vtanh.pop %v519
    %v522 = vtanh.pop %v520
    %v523 = vlaneseq
    %v524 = vshrl.u32 %v523, 7
    %v525 = vsub.s32 0, %v524
    %v526 = vrot.slane %v106, %v525
    %527 = vmatprep.subr.mxu0 0.0
    %528 = vmatpush1.msra.mxu0 %v71
    %529 = vmatprep.subr.mxu0 0.0
    %530 = vmatpush1.msra.mxu0 %v72
    %531 = vmatprep.subr.mxu0 0.0
    %532 = vmatpush1.msra.mxu0 %v73
    %533 = vmatprep.subr.mxu0 0.0
    %534 = vmatpush1.msra.mxu0 %v74
    %535 = vmatprep.subr.mxu0 0.0
    %536 = vmatpush1.msra.mxu0 %v75
    %537 = vmatprep.subr.mxu0 0.0
    %538 = vmatpush1.msra.mxu0 %v76
    %539 = vmatprep.subr.mxu0 0.0
    %540 = vmatpush1.msra.mxu0 %v77
    %541 = vmatprep.subr.mxu0 0.0
    %542 = vmatpush1.msra.mxu0 %v78
    %543 = vmatprep.subr.mxu0 0.0
    %544 = vmatpush1.msra.mxu0 %v79
    %545 = vmatprep.subr.mxu0 0.0
    %546 = vmatpush1.msra.mxu0 %v80
    %547 = vmatprep.subr.mxu0 0.0
    %548 = vmatpush1.msra.mxu0 %v81
    %549 = vmatprep.subr.mxu0 0.0
    %550 = vmatpush1.msra.mxu0 %v82
    %551 = vmatprep.subr.mxu0 0.0
    %552 = vmatpush1.msra.mxu0 %v83
    %553 = vmatprep.subr.mxu0 0.0
    %554 = vmatpush1.msra.mxu0 %v84
    %555 = vmatprep.subr.mxu0 0.0
    %556 = vmatpush1.msra.mxu0 %v85
    %557 = vmatprep.subr.mxu0 0.0
    %558 = vmatpush1.msra.mxu0 %v86
    %559 = vmatprep.subr.mxu0 0.0
    %560 = vmatpush1.msra.mxu0 0.0
    %561 = vmatprep.subr.mxu0 0.0
    %562 = vmatpush1.msra.mxu0 0.0
    %563 = vmatprep.subr.mxu0 0.0
    %564 = vmatpush1.msra.mxu0 0.0
    %565 = vmatprep.subr.mxu0 0.0
    %566 = vmatpush1.msra.mxu0 0.0
    %567 = vmatprep.subr.mxu0 0.0
    %568 = vmatpush1.msra.mxu0 0.0
    %569 = vmatprep.subr.mxu0 0.0
    %570 = vmatpush1.msra.mxu0 0.0
    %571 = vmatprep.subr.mxu0 0.0
    %572 = vmatpush1.msra.mxu0 0.0
    %573 = vmatprep.subr.mxu0 0.0
    %574 = vmatpush1.msra.mxu0 0.0
    %575 = vmatprep.subr.mxu0 0.0
    %576 = vmatpush1.msra.mxu0 0.0
    %577 = vmatprep.subr.mxu0 0.0
    %578 = vmatpush1.msra.mxu0 0.0
    %579 = vmatprep.subr.mxu0 0.0
    %580 = vmatpush1.msra.mxu0 0.0
    %581 = vmatprep.subr.mxu0 0.0
    %582 = vmatpush1.msra.mxu0 0.0
    %583 = vmatprep.subr.mxu0 0.0
    %584 = vmatpush1.msra.mxu0 0.0
    %585 = vmatprep.subr.mxu0 0.0
    %586 = vmatpush1.msra.mxu0 0.0
    %587 = vmatprep.subr.mxu0 0.0
    %588 = vmatpush1.msra.mxu0 0.0
    %589 = vmatprep.subr.mxu0 0.0
    %590 = vmatpush1.msra.mxu0 0.0
    %591 = vmatprep.mubr.f32.mxu0 0.0
    %592 = vmatmul.mubr.f32.gmra.mrb[0].mxu0 %v521
    %v593 = vpop.f32.mrb[0].mxu0
    %v594 = vadd.f32 %v526, %v593
    %v595 = vpop.f32.mrb[0].mxu0
    %596 = vmatprep.mubr.f32.mxu0 0.0
    %597 = vmatmul.mubr.f32.gmra.mrb[0].mxu0 %v522
    %v598 = vpop.f32.mrb[0].mxu0
    %v599 = vadd.f32 %v526, %v598
    %v600 = vpop.f32.mrb[0].mxu0
    %601 = vdwg.mxu0
    %v602 = vtanh.pop %v594
    %v603 = vtanh.pop %v599
    %v604 = vlaneseq
    %v605 = vshrl.u32 %v604, 7
    %v606 = vsub.s32 0, %v605
    %v607 = vrot.slane %v107, %v606
    %608 = vmatprep.subr.mxu0 0.0
    %609 = vmatpush1.msra.mxu0 %v87
    %610 = vmatprep.subr.mxu0 0.0
    %611 = vmatpush1.msra.mxu0 %v88
    %612 = vmatprep.subr.mxu0 0.0
    %613 = vmatpush1.msra.mxu0 %v89
    %614 = vmatprep.subr.mxu0 0.0
    %615 = vmatpush1.msra.mxu0 %v90
    %616 = vmatprep.subr.mxu0 0.0
    %617 = vmatpush1.msra.mxu0 %v91
    %618 = vmatprep.subr.mxu0 0.0
    %619 = vmatpush1.msra.mxu0 %v92
    %620 = vmatprep.subr.mxu0 0.0
    %621 = vmatpush1.msra.mxu0 %v93
    %622 = vmatprep.subr.mxu0 0.0
    %623 = vmatpush1.msra.mxu0 %v94
    %624 = vmatprep.subr.mxu0 0.0
    %625 = vmatpush1.msra.mxu0 %v95
    %626 = vmatprep.subr.mxu0 0.0
    %627 = vmatpush1.msra.mxu0 %v96
    %628 = vmatprep.subr.mxu0 0.0
    %629 = vmatpush1.msra.mxu0 %v97
    %630 = vmatprep.subr.mxu0 0.0
    %631 = vmatpush1.msra.mxu0 %v98
    %632 = vmatprep.subr.mxu0 0.0
    %633 = vmatpush1.msra.mxu0 %v99
    %634 = vmatprep.subr.mxu0 0.0
    %635 = vmatpush1.msra.mxu0 %v100
    %636 = vmatprep.subr.mxu0 0.0
    %637 = vmatpush1.msra.mxu0 %v101
    %638 = vmatprep.subr.mxu0 0.0
    %639 = vmatpush1.msra.mxu0 %v102
    %640 = vmatprep.subr.mxu0 0.0
    %641 = vmatpush1.msra.mxu0 0.0
    %642 = vmatprep.subr.mxu0 0.0
    %643 = vmatpush1.msra.mxu0 0.0
    %644 = vmatprep.subr.mxu0 0.0
    %645 = vmatpush1.msra.mxu0 0.0
    %646 = vmatprep.subr.mxu0 0.0
    %647 = vmatpush1.msra.mxu0 0.0
    %648 = vmatprep.subr.mxu0 0.0
    %649 = vmatpush1.msra.mxu0 0.0
    %650 = vmatprep.subr.mxu0 0.0
    %651 = vmatpush1.msra.mxu0 0.0
    %652 = vmatprep.subr.mxu0 0.0
    %653 = vmatpush1.msra.mxu0 0.0
    %654 = vmatprep.subr.mxu0 0.0
    %655 = vmatpush1.msra.mxu0 0.0
    %656 = vmatprep.subr.mxu0 0.0
    %657 = vmatpush1.msra.mxu0 0.0
    %658 = vmatprep.subr.mxu0 0.0
    %659 = vmatpush1.msra.mxu0 0.0
    %660 = vmatprep.subr.mxu0 0.0
    %661 = vmatpush1.msra.mxu0 0.0
    %662 = vmatprep.subr.mxu0 0.0
    %663 = vmatpush1.msra.mxu0 0.0
    %664 = vmatprep.subr.mxu0 0.0
    %665 = vmatpush1.msra.mxu0 0.0
    %666 = vmatprep.subr.mxu0 0.0
    %667 = vmatpush1.msra.mxu0 0.0
    %668 = vmatprep.subr.mxu0 0.0
    %669 = vmatpush1.msra.mxu0 0.0
    %670 = vmatprep.subr.mxu0 0.0
    %671 = vmatpush1.msra.mxu0 0.0
    %672 = vmatprep.mubr.f32.mxu0 0.0
    %673 = vmatmul.mubr.f32.gmra.mrb[0].mxu0 %v602
    %v674 = vpop.f32.mrb[0].mxu0
    %v675 = vadd.f32 %v607, %v674
    %v676 = vpop.f32.mrb[0].mxu0
    %677 = vmatprep.mubr.f32.mxu0 0.0
    %678 = vmatmul.mubr.f32.gmra.mrb[0].mxu0 %v603
    %v679 = vpop.f32.mrb[0].mxu0
    %v680 = vadd.f32 %v607, %v679
    %v681 = vpop.f32.mrb[0].mxu0
    %682 = vdwg.mxu0
    %683 = vst [vmem:[%s4] sm:$0xff] %v675
    %684 = vst [vmem:[%s4 + $0x8] sm:$0xff] %v680
    // Predicated region
    $region22: #{cnp_forward.1} parent=1 // pred_check
      _
    $region23: #{cnp_forward.1} parent=1 // pred_check_branch
      %686 = sbr.rel (0) target = $region25
    $region24: #{cnp_forward.1} parent=1 // pred_region
      _
    $region25: #{cnp_forward.1} parent=1 // pred_fallthru
      _
    // Predicated region
    $region26: #{cnp_forward.1} parent=1 // pred_check
      _
    $region27: #{cnp_forward.1} parent=1 // pred_check_branch
      %688 = sbr.rel (0) target = $region29
    $region28: #{cnp_forward.1} parent=1 // pred_region
      _
    $region29: #{cnp_forward.1} parent=1 // pred_fallthru
      _
    %689 = vsyncpa [#allocation3], 1

</llo_original>
